<compile_context>
chip_gen: v7x
topology: tpu7x:2x2x1
jax: 0.10.0
libtpu: 0.0.40
codegen_flags: <defaults>
</compile_context>

<pallas_src>
import functools

import jax
import jax.numpy as jnp
from jax import lax
from jax.experimental import pallas as pl
from jax.experimental.pallas import tpu as pltpu


def _round_up(v, m):
    return -(-v // m) * m


# ---------------------------------------------------------------------------
# Parameter slab packing (8-row-aligned static offsets => zero-cost ref views)
# ---------------------------------------------------------------------------
def _gin_offsets(cin, hid):
    ow1 = 0
    ob1 = _round_up(ow1 + cin, 8)
    ow2 = _round_up(ob1 + 1, 8)
    ob2 = _round_up(ow2 + hid, 8)
    rows = _round_up(ob2 + 1, 8)
    return ow1, ob1, ow2, ob2, rows


def pack_gin_params(w1, b1, w2, b2):
    cin, hid = w1.shape
    ow1, ob1, ow2, ob2, rows = _gin_offsets(cin, hid)
    slab = jnp.zeros((rows, hid), jnp.float32)
    slab = slab.at[ow1:ow1 + cin, :].set(w1.astype(jnp.float32))
    slab = slab.at[ob1, :].set(b1.reshape(-1).astype(jnp.float32))
    slab = slab.at[ow2:ow2 + hid, :].set(w2.astype(jnp.float32))
    slab = slab.at[ob2, :].set(b2.reshape(-1).astype(jnp.float32))
    return slab


def _head_offsets(hid):
    ow0 = 0
    ob0 = _round_up(ow0 + 2 * hid, 8)
    ow1 = _round_up(ob0 + 1, 8)
    ob1 = _round_up(ow1 + hid, 8)
    ow2 = _round_up(ob1 + 1, 8)
    ob2 = _round_up(ow2 + 1, 8)
    rows = _round_up(ob2 + 1, 8)
    return ow0, ob0, ow1, ob1, ow2, ob2, rows


def pack_head_params(mw0, mb0, mw1, mb1, mw2, mb2):
    h2, hid = mw0.shape            # (2H, H)
    hh = mw1.shape[1]              # H // 2
    ow0, ob0, ow1, ob1, ow2, ob2, rows = _head_offsets(hid)
    slab = jnp.zeros((rows, hid), jnp.float32)
    slab = slab.at[ow0:ow0 + h2, :].set(mw0.astype(jnp.float32))
    slab = slab.at[ob0, :].set(mb0.reshape(-1).astype(jnp.float32))
    slab = slab.at[ow1:ow1 + hid, :hh].set(mw1.astype(jnp.float32))
    slab = slab.at[ob1, :hh].set(mb1.reshape(-1).astype(jnp.float32))
    slab = slab.at[ow2, :hh].set(mw2.reshape(-1).astype(jnp.float32))     # (H//2, 1) -> row
    slab = slab.at[ob2, 0].set(jnp.reshape(mb2, ()).astype(jnp.float32))
    return slab


# ---------------------------------------------------------------------------
# Kernel 1 (one-time, call-invariant): 2-layer GIN stack -> (N, H) node emb.
# ---------------------------------------------------------------------------
def _gin_stack_kernel(a_ref, x0_ref, gslab_ref, out_ref, *, eps):
    f32 = jnp.float32
    cin = x0_ref.shape[1]
    hid = out_ref.shape[1]
    ow1, ob1, ow2, ob2, _ = _gin_offsets(cin, hid)

    a = a_ref[...]                                   # already divided by deg
    x = x0_ref[...]
    w1 = gslab_ref[ow1:ow1 + cin, :]
    b1 = gslab_ref[ob1:ob1 + 1, :]
    w2 = gslab_ref[ow2:ow2 + hid, :]
    b2 = gslab_ref[ob2:ob2 + 1, :]

    # GIN layer 0: ReLU(((1+eps0)*x + mean_neigh(x)) @ W1 + b1); dropout(eval) == id
    neigh = jnp.dot(a, x, preferred_element_type=f32)
    h = (x + neigh) if eps[0] == 0.0 else ((1.0 + eps[0]) * x + neigh)
    x = jnp.maximum(jnp.dot(h, w1, preferred_element_type=f32) + b1, 0.0)

    # GIN layer 1 (last layer: no ReLU)
    neigh = jnp.dot(a, x, preferred_element_type=f32)
    h = (x + neigh) if eps[1] == 0.0 else ((1.0 + eps[1]) * x + neigh)
    out_ref[...] = jnp.dot(h, w2, preferred_element_type=f32) + b2


# ---------------------------------------------------------------------------
# Kernel 2 (per call): one-hot gather (subsumes x[0]=0) + context MLP head.
# ---------------------------------------------------------------------------
def _head_kernel(idx_ref, x_ref, slab_ref, out_ref):
    f32 = jnp.float32
    bsz = idx_ref.shape[0]
    n, hid = x_ref.shape
    hh = hid // 2
    ow0, ob0, ow1, ob1, ow2, ob2, _ = _head_offsets(hid)

    # One-hot selection matrices from the index columns; masking rows where idx == 0
    # is exactly equivalent to x[0] = 0 followed by index_select.
    idx = idx_ref[...]                               # (B, 4) int32
    idx0 = idx[:, 0:1]
    idx1 = idx[:, 1:2]
    iota = lax.broadcasted_iota(jnp.int32, (bsz, n), 1)
    sel1 = ((iota == idx0) & (idx0 != 0)).astype(f32)    # (B, N)
    sel2 = ((iota == idx1) & (idx1 != 0)).astype(f32)    # (B, N)

    x = x_ref[...]                                   # (N, H), stays vreg-resident
    g1 = jnp.dot(sel1, x, preferred_element_type=f32)    # (B, H)
    g2 = jnp.dot(sel2, x, preferred_element_type=f32)    # (B, H)
    ycat = jnp.concatenate([g1, g2], axis=1)             # (B, 2H) = 64 lanes

    # Context MLP head; cat([ing1, ing2]) @ W0 done as one MXU dot on the lane-concat.
    w0 = slab_ref[ow0:ow0 + 2 * hid, :]
    b0 = slab_ref[ob0:ob0 + 1, :]
    y = jnp.maximum(jnp.dot(ycat, w0, preferred_element_type=f32) + b0, 0.0)

    w1 = slab_ref[ow1:ow1 + hid, 0:hh]
    b1 = slab_ref[ob1:ob1 + 1, 0:hh]
    y = jnp.maximum(jnp.dot(y, w1, preferred_element_type=f32) + b1, 0.0)

    # Final (B, H//2) @ (H//2, 1) on the VPU (multiply + lane reduce), not the MXU.
    w2r = slab_ref[ow2:ow2 + 1, 0:hh]
    b2 = slab_ref[ob2:ob2 + 1, 0:1]
    out_ref[...] = jnp.sum(y * w2r, axis=-1, keepdims=True) + b2


# ---------------------------------------------------------------------------
# Wrappers
# ---------------------------------------------------------------------------
def _full_specs(arrs):
    # Whole-array blocks; shapes equal the full array dims so the (8,128) rule is met.
    return [pl.BlockSpec(x.shape, lambda i, _nd=x.ndim: (0,) * _nd) for x in arrs]


def gin_node_embeddings(a, deg, ndata, w1, b1, w2, b2, *, eps):
    """One-time Pallas kernel: GIN stack output (N, H). Inputs are call-invariant."""
    n = a.shape[0]
    hid = w1.shape[1]
    a_norm = (a / deg).astype(jnp.float32)           # fold 'mean' normalization once
    gslab = pack_gin_params(w1, b1, w2, b2)
    ins = (a_norm, ndata.astype(jnp.float32), gslab)
    return pl.pallas_call(
        functools.partial(_gin_stack_kernel, eps=tuple(float(e) for e in eps)),
        grid=(1,),
        in_specs=_full_specs(ins),
        out_specs=pl.BlockSpec((n, hid), lambda i: (0, 0)),
        out_shape=jax.ShapeDtypeStruct((n, hid), jnp.float32),
        compiler_params=pltpu.CompilerParams(dimension_semantics=("arbitrary",)),
    )(*ins)
    # TODO(synk): eps is baked as a static constant; a traced/learned eps would need an
    # SMEM scalar operand instead.


def gin_mlp_head(indices, node_emb, head_slab):
    """Per-call Pallas kernel: 3 operands only (indices, node emb, packed weight slab)."""
    bsz = indices.shape[0]
    ins = (indices.astype(jnp.int32), node_emb, head_slab)
    return pl.pallas_call(
        _head_kernel,
        grid=(1,),
        in_specs=_full_specs(ins),
        out_specs=pl.BlockSpec((bsz, 1), lambda i: (0, 0)),
        out_shape=jax.ShapeDtypeStruct((bsz, 1), jnp.float32),
        compiler_params=pltpu.CompilerParams(dimension_semantics=("arbitrary",)),
    )(*ins)


def gin_mlp_forward(indices, a, deg, ndata, gin_weights, gin_biases, gin_eps,
                    mlp_weights, mlp_biases):
    """Full GIN_MLP forward (inference, no-title / no-set / avg config)."""
    # TODO(synk): with_titles / with_set / transformer context branches are
    # config-disabled; `context` and `nr` are unused in this configuration,
    # exactly as in the PyTorch forward.
    w1, w2 = gin_weights
    b1, b2 = gin_biases
    node_emb = gin_node_embeddings(a, deg, ndata, w1, b1, w2, b2, eps=gin_eps)
    mw0, mw1, mw2 = mlp_weights
    mb0, mb1, mb2 = mlp_biases
    head_slab = pack_head_params(mw0, mb0, mw1, mb1, mw2, mb2)
    return gin_mlp_head(indices, node_emb, head_slab)


if __name__ == "__main__":
    key = jax.random.PRNGKey(0)
    N = 32            # adj.num_nodes()
    C_IN = 16         # in_channels
    H = 32            # hidden_channels
    NUM_LAYERS = 2
    B = 8             # batch of index rows

    keys = jax.random.split(key, 10)

    # init_emb == 'random' -> nn.Embedding weight ~ N(0, 1)
    ndata = jax.random.normal(keys[0], (N, C_IN), jnp.float32)

    # synthetic weighted graph (dense adjacency, A[i, j] = weight of edge j -> i)
    mask = (jax.random.uniform(keys[1], (N, N)) < 0.25).astype(jnp.float32)
    ew = jax.random.uniform(keys[2], (N, N), jnp.float32, 0.1, 1.0)
    A = mask * ew
    deg = jnp.maximum(jnp.sum(mask, axis=1, keepdims=True), 1.0)

    def linear_init(k, fan_in, fan_out):
        bound = 1.0 / (fan_in ** 0.5)
        k1, k2 = jax.random.split(k)
        w = jax.random.uniform(k1, (fan_in, fan_out), jnp.float32, -bound, bound)
        b = jax.random.uniform(k2, (fan_out,), jnp.float32, -bound, bound)
        return w, b

    # GIN apply-funcs: lin1 (C_IN -> H), lin2 (H -> H)
    w1, b1 = linear_init(keys[3], C_IN, H)
    w2, b2 = linear_init(keys[4], H, H)
    GIN_EPS = (0.0,) * NUM_LAYERS          # learn_eps=True, DGL init_eps default 0

    # mlp_layers_context (no titles / no set): Linear(2H,H), Linear(H,H//2), Linear(H//2,1)
    mw0, mb0 = linear_init(keys[5], 2 * H, H)
    mw1, mb1 = linear_init(keys[6], H, H // 2)
    mw2, mb2 = linear_init(keys[7], H // 2, 1)

    indices = jax.random.randint(keys[8], (B, 4), 0, N, dtype=jnp.int32)

    # --- hoisted per-call path: GIN stack computed once, head kernel per call ------
    precompute = jax.jit(functools.partial(gin_node_embeddings, eps=GIN_EPS))
    node_emb = precompute(A, deg, ndata, w1, b1, w2, b2)       # cached across calls
    head_slab = jax.jit(pack_head_params)(mw0, mb0, mw1, mb1, mw2, mb2)
    head = jax.jit(gin_mlp_head)
    out = head(indices, node_emb, head_slab)
    jax.block_until_ready(out)

    # --- composed full-forward path (same two kernels inside one jit) --------------
    full_forward = jax.jit(functools.partial(
        gin_mlp_forward, a=A, deg=deg, ndata=ndata,
        gin_weights=(w1, w2), gin_biases=(b1, b2), gin_eps=GIN_EPS,
        mlp_weights=(mw0, mw1, mw2), mlp_biases=(mb0, mb1, mb2)))
    out_full = full_forward(indices)
    jax.block_until_ready(out_full)

    # --- pure-JAX reference (mirrors the PyTorch forward) ---------------------------
    def reference_forward(idx):
        x = ndata
        params = [(w1, b1), (w2, b2)]
        for li, (w, b) in enumerate(params):
            neigh = (A @ x) / deg
            x = (1.0 + GIN_EPS[li]) * x + neigh
            x = x @ w + b
            if li < NUM_LAYERS - 1:
                x = jnp.maximum(x, 0.0)
        x = x.at[0].set(0.0)
        y = jnp.concatenate([x[idx[:, 0]], x[idx[:, 1]]], axis=1)
        y = jnp.maximum(y @ mw0 + mb0, 0.0)
        y = jnp.maximum(y @ mw1 + mb1, 0.0)
        return y @ mw2 + mb2

    ref = reference_forward(indices)
    assert out.shape == (B, 1) and out.dtype == jnp.float32
    assert bool(jnp.allclose(out, ref, rtol=1e-3, atol=1e-3)), "head-path mismatch"
    assert bool(jnp.allclose(out_full, ref, rtol=1e-3, atol=1e-3)), "full-path mismatch"
    print("KERNEL_OK")
</pallas_src>

<mosaic_0001>
module attributes {stable_mosaic.version = 11 : i64} {
  func.func @_gin_stack_kernel(%arg0: i32, %arg1: memref<32x32xf32, #tpu.memory_space<vmem>>, %arg2: memref<32x16xf32, #tpu.memory_space<vmem>>, %arg3: memref<64x32xf32, #tpu.memory_space<vmem>>, %arg4: memref<32x32xf32, #tpu.memory_space<vmem>>) attributes {dimension_semantics = [#tpu.dimension_semantics<arbitrary>], iteration_bounds = array<i64: 1>, scalar_prefetch = 0 : i64, scratch_operands = 0 : i64, tpu.core_type = #tpu.core_type<tc>, window_params = [{pipeline_mode = #tpu.pipeline_mode<synchronous>, transform_indices = @transform_0, window_bounds = array<i64: 32, 32>}, {pipeline_mode = #tpu.pipeline_mode<synchronous>, transform_indices = @transform_1, window_bounds = array<i64: 32, 16>}, {pipeline_mode = #tpu.pipeline_mode<synchronous>, transform_indices = @transform_2, window_bounds = array<i64: 64, 32>}, {pipeline_mode = #tpu.pipeline_mode<synchronous>, transform_indices = @transform_3, window_bounds = array<i64: 32, 32>}]} {
    %c0 = arith.constant 0 : index
    %c0_0 = arith.constant 0 : index
    %0 = vector.load %arg1[%c0, %c0_0] : memref<32x32xf32, #tpu.memory_space<vmem>>, vector<32x32xf32>
    %c0_1 = arith.constant 0 : index
    %c0_2 = arith.constant 0 : index
    %1 = vector.load %arg2[%c0_1, %c0_2] : memref<32x16xf32, #tpu.memory_space<vmem>>, vector<32x16xf32>
    %c0_3 = arith.constant 0 : index
    %c0_4 = arith.constant 0 : index
    %2 = vector.load %arg3[%c0_3, %c0_4] : memref<64x32xf32, #tpu.memory_space<vmem>>, vector<16x32xf32>
    %c16 = arith.constant 16 : index
    %c0_5 = arith.constant 0 : index
    %3 = vector.load %arg3[%c16, %c0_5] : memref<64x32xf32, #tpu.memory_space<vmem>>, vector<1x32xf32>
    %c24 = arith.constant 24 : index
    %c0_6 = arith.constant 0 : index
    %4 = vector.load %arg3[%c24, %c0_6] : memref<64x32xf32, #tpu.memory_space<vmem>>, vector<32x32xf32>
    %c56 = arith.constant 56 : index
    %c0_7 = arith.constant 0 : index
    %5 = vector.load %arg3[%c56, %c0_7] : memref<64x32xf32, #tpu.memory_space<vmem>>, vector<1x32xf32>
    %cst = arith.constant dense<0.000000e+00> : vector<32x16xf32>
    %6 = tpu.matmul %0, %1, %cst {dimension_numbers = #tpu.dot_dimension_numbers<[1], [0], [0], [1], [0, 0, 1, 1], [], []>} : vector<32x32xf32>, vector<32x16xf32>, vector<32x16xf32> -> vector<32x16xf32>
    %7 = arith.addf %1, %6 : vector<32x16xf32>
    %cst_8 = arith.constant dense<0.000000e+00> : vector<32x32xf32>
    %8 = tpu.matmul %7, %2, %cst_8 {dimension_numbers = #tpu.dot_dimension_numbers<[1], [0], [0], [1], [0, 0, 1, 1], [], []>} : vector<32x16xf32>, vector<16x32xf32>, vector<32x32xf32> -> vector<32x32xf32>
    %9 = vector.broadcast %3 : vector<1x32xf32> to vector<32x32xf32>
    %10 = arith.addf %8, %9 : vector<32x32xf32>
    %cst_9 = arith.constant 0.000000e+00 : f32
    %11 = vector.broadcast %cst_9 : f32 to vector<32x32xf32>
    %12 = arith.maximumf %10, %11 : vector<32x32xf32>
    %cst_10 = arith.constant dense<0.000000e+00> : vector<32x32xf32>
    %13 = tpu.matmul %0, %12, %cst_10 {dimension_numbers = #tpu.dot_dimension_numbers<[1], [0], [0], [1], [0, 0, 1, 1], [], []>} : vector<32x32xf32>, vector<32x32xf32>, vector<32x32xf32> -> vector<32x32xf32>
    %14 = arith.addf %12, %13 : vector<32x32xf32>
    %cst_11 = arith.constant dense<0.000000e+00> : vector<32x32xf32>
    %15 = tpu.matmul %14, %4, %cst_11 {dimension_numbers = #tpu.dot_dimension_numbers<[1], [0], [0], [1], [0, 0, 1, 1], [], []>} : vector<32x32xf32>, vector<32x32xf32>, vector<32x32xf32> -> vector<32x32xf32>
    %16 = vector.broadcast %5 : vector<1x32xf32> to vector<32x32xf32>
    %17 = arith.addf %15, %16 : vector<32x32xf32>
    %c0_12 = arith.constant 0 : index
    %c0_13 = arith.constant 0 : index
    %18 = vector.load %arg4[%c0_12, %c0_13] : memref<32x32xf32, #tpu.memory_space<vmem>>, vector<32x32xf32>
    tpu.vector_store %arg4[%c0_12, %c0_13], %17 {strides = array<i32>} : memref<32x32xf32, #tpu.memory_space<vmem>>, vector<32x32xf32>,
    return
  }
  func.func @transform_0(%arg0: i32) -> (i32, i32) {
    %c0_i32 = arith.constant 0 : i32
    %c0_i32_0 = arith.constant 0 : i32
    %c0_i32_1 = arith.constant 0 : i32
    return %c0_i32, %c0_i32_0 : i32, i32
  }
  func.func @transform_1(%arg0: i32) -> (i32, i32) {
    %c0_i32 = arith.constant 0 : i32
    %c0_i32_0 = arith.constant 0 : i32
    %c0_i32_1 = arith.constant 0 : i32
    return %c0_i32, %c0_i32_0 : i32, i32
  }
  func.func @transform_2(%arg0: i32) -> (i32, i32) {
    %c0_i32 = arith.constant 0 : i32
    %c0_i32_0 = arith.constant 0 : i32
    %c0_i32_1 = arith.constant 0 : i32
    return %c0_i32, %c0_i32_0 : i32, i32
  }
  func.func @transform_3(%arg0: i32) -> (i32, i32) {
    %c0_i32 = arith.constant 0 : i32
    %c0_i32_0 = arith.constant 0 : i32
    %c0_i32_1 = arith.constant 0 : i32
    return %c0_i32, %c0_i32_0 : i32, i32
  }
}

</mosaic_0001>

<llo_original>
// kernel: gin_node_embeddings.1
$region0: #{gin_node_embeddings.1}
  #allocation0 [shape = 'u32[]', space=smem, size = 0x4, offset = 0x4, fixed_abs, tag = 'smem constant byte address 0x4 - core index']
  #allocation1 [shape = 'u32[144,128]{1,0:T(1,128)}', space=vmem, size = 0x12000, scoped, tag = 'internal scratch']
  %s0 = inlined_call_operand.vmem [shape: f32[32,32], index: 0, kind: input, shape index: {}]
  %s1 = inlined_call_operand.vmem [shape: f32[32,16], index: 1, kind: input, shape index: {}]
  %s2 = inlined_call_operand.vmem [shape: f32[64,32], index: 2, kind: input, shape index: {}]
  %s3 = inlined_call_operand.hbm [shape: f32[32,32], index: 3, kind: output, shape index: {}]
  %s4 = sld [smem:[#allocation0]]
  $region22: #{gin_node_embeddings.1} parent=0
    _
  %s6 = ssub.s32 1, %s4
  %s7 = scalar_select 0, %s6, %s4
  $region1: #{gin_node_embeddings.1} parent=0
    #allocation2 [shape = 'u8[16384]{0}', space=vmem, size = 0x4000, scoped, tag = 'output window, operand 0, single buffered']
    #allocation3 [shape = 's32[1]{0}', space=sflag, size = 0x4, scoped, tag = 'scoped memory for gin_node_embeddings.1']
    %8 = vsyncpa [#allocation3], 0
    // Predicated region
    $region2: #{gin_node_embeddings.1} parent=1 // pred_check
      _
    $region3: #{gin_node_embeddings.1} parent=1 // pred_check_branch
      %10 = sbr.rel (0) target = $region5
    $region4: #{gin_node_embeddings.1} parent=1 // pred_region
      _
    $region5: #{gin_node_embeddings.1} parent=1 // pred_fallthru
      _
    // Predicated region
    $region6: #{gin_node_embeddings.1} parent=1 // pred_check
      _
    $region7: #{gin_node_embeddings.1} parent=1 // pred_check_branch
      %12 = sbr.rel (0) target = $region9
    $region8: #{gin_node_embeddings.1} parent=1 // pred_region
      _
    $region9: #{gin_node_embeddings.1} parent=1 // pred_fallthru
      _
    // Predicated region
    $region10: #{gin_node_embeddings.1} parent=1 // pred_check
      _
    $region11: #{gin_node_embeddings.1} parent=1 // pred_check_branch
      %14 = sbr.rel (0) target = $region13
    $region12: #{gin_node_embeddings.1} parent=1 // pred_region
      _
    $region13: #{gin_node_embeddings.1} parent=1 // pred_fallthru
      _
    %v15 = vld [vmem:[%s0] sm:$0xff]
    %v16 = vld [vmem:[%s0 + $0x8] sm:$0xff]
    %v17 = vld [vmem:[%s0 + $0x10] sm:$0xff]
    %v18 = vld [vmem:[%s0 + $0x18] sm:$0xff]
    %v19 = vld [vmem:[%s1] sm:$0xff]
    %v20 = vld [vmem:[%s1 + $0x8] sm:$0xff]
    %v21 = vld [vmem:[%s1 + $0x10] sm:$0xff]
    %v22 = vld [vmem:[%s1 + $0x18] sm:$0xff]
    %v23 = vld [vmem:[%s2] sm:$0xff]
    %v24 = vld [vmem:[%s2 + $0x8] sm:$0xff]
    %v25 = vld [vmem:[%s2 + $0x10] sm:$0x1]
    %v26 = vld [vmem:[%s2 + $0x18] sm:$0xff]
    %v27 = vld [vmem:[%s2 + $0x20] sm:$0xff]
    %v28 = vld [vmem:[%s2 + $0x28] sm:$0xff]
    %v29 = vld [vmem:[%s2 + $0x30] sm:$0xff]
    %v30 = vld [vmem:[%s2 + $0x38] sm:$0x1]
    %vm31 = vcmask 261120
    %v33 = vsel %vm31, %v15, 0
    %v36 = vsel %vm31, %v16, 0
    %v39 = vsel %vm31, %v17, 0
    %v42 = vsel %vm31, %v18, 0
    %44 = vmatprep.subr.mxu0 0.0
    %45 = vmatpush1.msra.mxu0 %v19
    %46 = vmatprep.subr.mxu0 0.0
    %47 = vmatpush1.msra.mxu0 %v20
    %48 = vmatprep.subr.mxu0 0.0
    %49 = vmatpush1.msra.mxu0 %v21
    %50 = vmatprep.subr.mxu0 0.0
    %51 = vmatpush1.msra.mxu0 %v22
    %52 = vmatprep.subr.mxu0 0.0
    %53 = vmatpush1.msra.mxu0 0.0
    %54 = vmatprep.subr.mxu0 0.0
    %55 = vmatpush1.msra.mxu0 0.0
    %56 = vmatprep.subr.mxu0 0.0
    %57 = vmatpush1.msra.mxu0 0.0
    %58 = vmatprep.subr.mxu0 0.0
    %59 = vmatpush1.msra.mxu0 0.0
    %60 = vmatprep.subr.mxu0 0.0
    %61 = vmatpush1.msra.mxu0 0.0
    %62 = vmatprep.subr.mxu0 0.0
    %63 = vmatpush1.msra.mxu0 0.0
    %64 = vmatprep.subr.mxu0 0.0
    %65 = vmatpush1.msra.mxu0 0.0
    %66 = vmatprep.subr.mxu0 0.0
    %67 = vmatpush1.msra.mxu0 0.0
    %68 = vmatprep.subr.mxu0 0.0
    %69 = vmatpush1.msra.mxu0 0.0
    %70 = vmatprep.subr.mxu0 0.0
    %71 = vmatpush1.msra.mxu0 0.0
    %72 = vmatprep.subr.mxu0 0.0
    %73 = vmatpush1.msra.mxu0 0.0
    %74 = vmatprep.subr.mxu0 0.0
    %75 = vmatpush1.msra.mxu0 0.0
    %76 = vmatprep.subr.mxu0 0.0
    %77 = vmatpush1.msra.mxu0 0.0
    %78 = vmatprep.subr.mxu0 0.0
    %79 = vmatpush1.msra.mxu0 0.0
    %80 = vmatprep.subr.mxu0 0.0
    %81 = vmatpush1.msra.mxu0 0.0
    %82 = vmatprep.subr.mxu0 0.0
    %83 = vmatpush1.msra.mxu0 0.0
    %84 = vmatprep.subr.mxu0 0.0
    %85 = vmatpush1.msra.mxu0 0.0
    %86 = vmatprep.subr.mxu0 0.0
    %87 = vmatpush1.msra.mxu0 0.0
    %88 = vmatprep.subr.mxu0 0.0
    %89 = vmatpush1.msra.mxu0 0.0
    %90 = vmatprep.subr.mxu0 0.0
    %91 = vmatpush1.msra.mxu0 0.0
    %92 = vmatprep.subr.mxu0 0.0
    %93 = vmatpush1.msra.mxu0 0.0
    %94 = vmatprep.subr.mxu0 0.0
    %95 = vmatpush1.msra.mxu0 0.0
    %96 = vmatprep.subr.mxu0 0.0
    %97 = vmatpush1.msra.mxu0 0.0
    %98 = vmatprep.subr.mxu0 0.0
    %99 = vmatpush1.msra.mxu0 0.0
    %100 = vmatprep.subr.mxu0 0.0
    %101 = vmatpush1.msra.mxu0 0.0
    %102 = vmatprep.subr.mxu0 0.0
    %103 = vmatpush1.msra.mxu0 0.0
    %104 = vmatprep.subr.mxu0 0.0
    %105 = vmatpush1.msra.mxu0 0.0
    %106 = vmatprep.subr.mxu0 0.0
    %107 = vmatpush1.msra.mxu0 0.0
    %108 = vmatprep.mubr.f32.mxu0 0.0
    %109 = vmatmul.mubr.f32.gmra.mrb[0].mxu0 %v33
    %v110 = vpop.f32.mrb[0].mxu0
    %v111 = vadd.f32 0.0, %v110
    %v112 = vpop.f32.mrb[0].mxu0
    %113 = vmatprep.mubr.f32.mxu0 0.0
    %114 = vmatmul.mubr.f32.gmra.mrb[0].mxu0 %v36
    %v115 = vpop.f32.mrb[0].mxu0
    %v116 = vadd.f32 0.0, %v115
    %v117 = vpop.f32.mrb[0].mxu0
    %118 = vmatprep.mubr.f32.mxu0 0.0
    %119 = vmatmul.mubr.f32.gmra.mrb[0].mxu0 %v39
    %v120 = vpop.f32.mrb[0].mxu0
    %v121 = vadd.f32 0.0, %v120
    %v122 = vpop.f32.mrb[0].mxu0
    %123 = vmatprep.mubr.f32.mxu0 0.0
    %124 = vmatmul.mubr.f32.gmra.mrb[0].mxu0 %v42
    %v125 = vpop.f32.mrb[0].mxu0
    %v126 = vadd.f32 0.0, %v125
    %v127 = vpop.f32.mrb[0].mxu0
    %128 = vdwg.mxu0
    %v129 = vadd.f32 %v19, %v111
    %v130 = vadd.f32 %v20, %v116
    %v131 = vadd.f32 %v21, %v121
    %v132 = vadd.f32 %v22, %v126
    %v133 = vlaneseq
    %v134 = vshrl.u32 %v133, 7
    %v135 = vsub.s32 0, %v134
    %v136 = vrot.slane %v25, %v135
    %vm137 = vcmask 130048
    %v139 = vsel %vm137, %v129, 0
    %v142 = vsel %vm137, %v130, 0
    %v145 = vsel %vm137, %v131, 0
    %v148 = vsel %vm137, %v132, 0
    %150 = vmatprep.subr.mxu0 0.0
    %151 = vmatpush1.msra.mxu0 %v23
    %152 = vmatprep.subr.mxu0 0.0
    %153 = vmatpush1.msra.mxu0 %v24
    %154 = vmatprep.subr.mxu0 0.0
    %155 = vmatpush1.msra.mxu0 0.0
    %156 = vmatprep.subr.mxu0 0.0
    %157 = vmatpush1.msra.mxu0 0.0
    %158 = vmatprep.subr.mxu0 0.0
    %159 = vmatpush1.msra.mxu0 0.0
    %160 = vmatprep.subr.mxu0 0.0
    %161 = vmatpush1.msra.mxu0 0.0
    %162 = vmatprep.subr.mxu0 0.0
    %163 = vmatpush1.msra.mxu0 0.0
    %164 = vmatprep.subr.mxu0 0.0
    %165 = vmatpush1.msra.mxu0 0.0
    %166 = vmatprep.subr.mxu0 0.0
    %167 = vmatpush1.msra.mxu0 0.0
    %168 = vmatprep.subr.mxu0 0.0
    %169 = vmatpush1.msra.mxu0 0.0
    %170 = vmatprep.subr.mxu0 0.0
    %171 = vmatpush1.msra.mxu0 0.0
    %172 = vmatprep.subr.mxu0 0.0
    %173 = vmatpush1.msra.mxu0 0.0
    %174 = vmatprep.subr.mxu0 0.0
    %175 = vmatpush1.msra.mxu0 0.0
    %176 = vmatprep.subr.mxu0 0.0
    %177 = vmatpush1.msra.mxu0 0.0
    %178 = vmatprep.subr.mxu0 0.0
    %179 = vmatpush1.msra.mxu0 0.0
    %180 = vmatprep.subr.mxu0 0.0
    %181 = vmatpush1.msra.mxu0 0.0
    %182 = vmatprep.subr.mxu0 0.0
    %183 = vmatpush1.msra.mxu0 0.0
    %184 = vmatprep.subr.mxu0 0.0
    %185 = vmatpush1.msra.mxu0 0.0
    %186 = vmatprep.subr.mxu0 0.0
    %187 = vmatpush1.msra.mxu0 0.0
    %188 = vmatprep.subr.mxu0 0.0
    %189 = vmatpush1.msra.mxu0 0.0
    %190 = vmatprep.subr.mxu0 0.0
    %191 = vmatpush1.msra.mxu0 0.0
    %192 = vmatprep.subr.mxu0 0.0
    %193 = vmatpush1.msra.mxu0 0.0
    %194 = vmatprep.subr.mxu0 0.0
    %195 = vmatpush1.msra.mxu0 0.0
    %196 = vmatprep.subr.mxu0 0.0
    %197 = vmatpush1.msra.mxu0 0.0
    %198 = vmatprep.subr.mxu0 0.0
    %199 = vmatpush1.msra.mxu0 0.0
    %200 = vmatprep.subr.mxu0 0.0
    %201 = vmatpush1.msra.mxu0 0.0
    %202 = vmatprep.subr.mxu0 0.0
    %203 = vmatpush1.msra.mxu0 0.0
    %204 = vmatprep.subr.mxu0 0.0
    %205 = vmatpush1.msra.mxu0 0.0
    %206 = vmatprep.subr.mxu0 0.0
    %207 = vmatpush1.msra.mxu0 0.0
    %208 = vmatprep.subr.mxu0 0.0
    %209 = vmatpush1.msra.mxu0 0.0
    %210 = vmatprep.subr.mxu0 0.0
    %211 = vmatpush1.msra.mxu0 0.0
    %212 = vmatprep.subr.mxu0 0.0
    %213 = vmatpush1.msra.mxu0 0.0
    %214 = vmatprep.mubr.f32.mxu0 0.0
    %215 = vmatmul.mubr.f32.gmra.mrb[0].mxu0 %v139
    %v216 = vpop.f32.mrb[0].mxu0
    %v217 = vadd.f32 %v136, %v216
    %v218 = vpop.f32.mrb[0].mxu0
    %219 = vmatprep.mubr.f32.mxu0 0.0
    %220 = vmatmul.mubr.f32.gmra.mrb[0].mxu0 %v142
    %v221 = vpop.f32.mrb[0].mxu0
    %v222 = vadd.f32 %v136, %v221
    %v223 = vpop.f32.mrb[0].mxu0
    %224 = vmatprep.mubr.f32.mxu0 0.0
    %225 = vmatmul.mubr.f32.gmra.mrb[0].mxu0 %v145
    %v226 = vpop.f32.mrb[0].mxu0
    %v227 = vadd.f32 %v136, %v226
    %v228 = vpop.f32.mrb[0].mxu0
    %229 = vmatprep.mubr.f32.mxu0 0.0
    %230 = vmatmul.mubr.f32.gmra.mrb[0].mxu0 %v148
    %v231 = vpop.f32.mrb[0].mxu0
    %v232 = vadd.f32 %v136, %v231
    %v233 = vpop.f32.mrb[0].mxu0
    %234 = vdwg.mxu0
    %v235 = vmax.f32 %v217, 0.0
    %v236 = vmax.f32 %v222, 0.0
    %v237 = vmax.f32 %v227, 0.0
    %v238 = vmax.f32 %v232, 0.0
    %239 = vmatprep.subr.mxu0 0.0
    %240 = vmatpush1.msra.mxu0 %v235
    %241 = vmatprep.subr.mxu0 0.0
    %242 = vmatpush1.msra.mxu0 %v236
    %243 = vmatprep.subr.mxu0 0.0
    %244 = vmatpush1.msra.mxu0 %v237
    %245 = vmatprep.subr.mxu0 0.0
    %246 = vmatpush1.msra.mxu0 %v238
    %247 = vmatprep.subr.mxu0 0.0
    %248 = vmatpush1.msra.mxu0 0.0
    %249 = vmatprep.subr.mxu0 0.0
    %250 = vmatpush1.msra.mxu0 0.0
    %251 = vmatprep.subr.mxu0 0.0
    %252 = vmatpush1.msra.mxu0 0.0
    %253 = vmatprep.subr.mxu0 0.0
    %254 = vmatpush1.msra.mxu0 0.0
    %255 = vmatprep.subr.mxu0 0.0
    %256 = vmatpush1.msra.mxu0 0.0
    %257 = vmatprep.subr.mxu0 0.0
    %258 = vmatpush1.msra.mxu0 0.0
    %259 = vmatprep.subr.mxu0 0.0
    %260 = vmatpush1.msra.mxu0 0.0
    %261 = vmatprep.subr.mxu0 0.0
    %262 = vmatpush1.msra.mxu0 0.0
    %263 = vmatprep.subr.mxu0 0.0
    %264 = vmatpush1.msra.mxu0 0.0
    %265 = vmatprep.subr.mxu0 0.0
    %266 = vmatpush1.msra.mxu0 0.0
    %267 = vmatprep.subr.mxu0 0.0
    %268 = vmatpush1.msra.mxu0 0.0
    %269 = vmatprep.subr.mxu0 0.0
    %270 = vmatpush1.msra.mxu0 0.0
    %271 = vmatprep.subr.mxu0 0.0
    %272 = vmatpush1.msra.mxu0 0.0
    %273 = vmatprep.subr.mxu0 0.0
    %274 = vmatpush1.msra.mxu0 0.0
    %275 = vmatprep.subr.mxu0 0.0
    %276 = vmatpush1.msra.mxu0 0.0
    %277 = vmatprep.subr.mxu0 0.0
    %278 = vmatpush1.msra.mxu0 0.0
    %279 = vmatprep.subr.mxu0 0.0
    %280 = vmatpush1.msra.mxu0 0.0
    %281 = vmatprep.subr.mxu0 0.0
    %282 = vmatpush1.msra.mxu0 0.0
    %283 = vmatprep.subr.mxu0 0.0
    %284 = vmatpush1.msra.mxu0 0.0
    %285 = vmatprep.subr.mxu0 0.0
    %286 = vmatpush1.msra.mxu0 0.0
    %287 = vmatprep.subr.mxu0 0.0
    %288 = vmatpush1.msra.mxu0 0.0
    %289 = vmatprep.subr.mxu0 0.0
    %290 = vmatpush1.msra.mxu0 0.0
    %291 = vmatprep.subr.mxu0 0.0
    %292 = vmatpush1.msra.mxu0 0.0
    %293 = vmatprep.subr.mxu0 0.0
    %294 = vmatpush1.msra.mxu0 0.0
    %295 = vmatprep.subr.mxu0 0.0
    %296 = vmatpush1.msra.mxu0 0.0
    %297 = vmatprep.subr.mxu0 0.0
    %298 = vmatpush1.msra.mxu0 0.0
    %299 = vmatprep.subr.mxu0 0.0
    %300 = vmatpush1.msra.mxu0 0.0
    %301 = vmatprep.subr.mxu0 0.0
    %302 = vmatpush1.msra.mxu0 0.0
    %303 = vmatprep.mubr.f32.mxu0 0.0
    %304 = vmatmul.mubr.f32.gmra.mrb[0].mxu0 %v33
    %v305 = vpop.f32.mrb[0].mxu0
    %v306 = vadd.f32 0.0, %v305
    %v307 = vpop.f32.mrb[0].mxu0
    %308 = vmatprep.mubr.f32.mxu0 0.0
    %309 = vmatmul.mubr.f32.gmra.mrb[0].mxu0 %v36
    %v310 = vpop.f32.mrb[0].mxu0
    %v311 = vadd.f32 0.0, %v310
    %v312 = vpop.f32.mrb[0].mxu0
    %313 = vmatprep.mubr.f32.mxu0 0.0
    %314 = vmatmul.mubr.f32.gmra.mrb[0].mxu0 %v39
    %v315 = vpop.f32.mrb[0].mxu0
    %v316 = vadd.f32 0.0, %v315
    %v317 = vpop.f32.mrb[0].mxu0
    %318 = vmatprep.mubr.f32.mxu0 0.0
    %319 = vmatmul.mubr.f32.gmra.mrb[0].mxu0 %v42
    %v320 = vpop.f32.mrb[0].mxu0
    %v321 = vadd.f32 0.0, %v320
    %v322 = vpop.f32.mrb[0].mxu0
    %323 = vdwg.mxu0
    %v324 = vadd.f32 %v235, %v306
    %v325 = vadd.f32 %v236, %v311
    %v326 = vadd.f32 %v237, %v316
    %v327 = vadd.f32 %v238, %v321
    %v328 = vlaneseq
    %v329 = vshrl.u32 %v328, 7
    %v330 = vsub.s32 0, %v329
    %v331 = vrot.slane %v30, %v330
    %v333 = vsel %vm31, %v324, 0
    %v336 = vsel %vm31, %v325, 0
    %v339 = vsel %vm31, %v326, 0
    %v342 = vsel %vm31, %v327, 0
    %344 = vmatprep.subr.mxu0 0.0
    %345 = vmatpush1.msra.mxu0 %v26
    %346 = vmatprep.subr.mxu0 0.0
    %347 = vmatpush1.msra.mxu0 %v27
    %348 = vmatprep.subr.mxu0 0.0
    %349 = vmatpush1.msra.mxu0 %v28
    %350 = vmatprep.subr.mxu0 0.0
    %351 = vmatpush1.msra.mxu0 %v29
    %352 = vmatprep.subr.mxu0 0.0
    %353 = vmatpush1.msra.mxu0 0.0
    %354 = vmatprep.subr.mxu0 0.0
    %355 = vmatpush1.msra.mxu0 0.0
    %356 = vmatprep.subr.mxu0 0.0
    %357 = vmatpush1.msra.mxu0 0.0
    %358 = vmatprep.subr.mxu0 0.0
    %359 = vmatpush1.msra.mxu0 0.0
    %360 = vmatprep.subr.mxu0 0.0
    %361 = vmatpush1.msra.mxu0 0.0
    %362 = vmatprep.subr.mxu0 0.0
    %363 = vmatpush1.msra.mxu0 0.0
    %364 = vmatprep.subr.mxu0 0.0
    %365 = vmatpush1.msra.mxu0 0.0
    %366 = vmatprep.subr.mxu0 0.0
    %367 = vmatpush1.msra.mxu0 0.0
    %368 = vmatprep.subr.mxu0 0.0
    %369 = vmatpush1.msra.mxu0 0.0
    %370 = vmatprep.subr.mxu0 0.0
    %371 = vmatpush1.msra.mxu0 0.0
    %372 = vmatprep.subr.mxu0 0.0
    %373 = vmatpush1.msra.mxu0 0.0
    %374 = vmatprep.subr.mxu0 0.0
    %375 = vmatpush1.msra.mxu0 0.0
    %376 = vmatprep.subr.mxu0 0.0
    %377 = vmatpush1.msra.mxu0 0.0
    %378 = vmatprep.subr.mxu0 0.0
    %379 = vmatpush1.msra.mxu0 0.0
    %380 = vmatprep.subr.mxu0 0.0
    %381 = vmatpush1.msra.mxu0 0.0
    %382 = vmatprep.subr.mxu0 0.0
    %383 = vmatpush1.msra.mxu0 0.0
    %384 = vmatprep.subr.mxu0 0.0
    %385 = vmatpush1.msra.mxu0 0.0
    %386 = vmatprep.subr.mxu0 0.0
    %387 = vmatpush1.msra.mxu0 0.0
    %388 = vmatprep.subr.mxu0 0.0
    %389 = vmatpush1.msra.mxu0 0.0
    %390 = vmatprep.subr.mxu0 0.0
    %391 = vmatpush1.msra.mxu0 0.0
    %392 = vmatprep.subr.mxu0 0.0
    %393 = vmatpush1.msra.mxu0 0.0
    %394 = vmatprep.subr.mxu0 0.0
    %395 = vmatpush1.msra.mxu0 0.0
    %396 = vmatprep.subr.mxu0 0.0
    %397 = vmatpush1.msra.mxu0 0.0
    %398 = vmatprep.subr.mxu0 0.0
    %399 = vmatpush1.msra.mxu0 0.0
    %400 = vmatprep.subr.mxu0 0.0
    %401 = vmatpush1.msra.mxu0 0.0
    %402 = vmatprep.subr.mxu0 0.0
    %403 = vmatpush1.msra.mxu0 0.0
    %404 = vmatprep.subr.mxu0 0.0
    %405 = vmatpush1.msra.mxu0 0.0
    %406 = vmatprep.subr.mxu0 0.0
    %407 = vmatpush1.msra.mxu0 0.0
    %408 = vmatprep.mubr.f32.mxu0 0.0
    %409 = vmatmul.mubr.f32.gmra.mrb[0].mxu0 %v333
    %v410 = vpop.f32.mrb[0].mxu0
    %v411 = vadd.f32 %v331, %v410
    %v412 = vpop.f32.mrb[0].mxu0
    %413 = vmatprep.mubr.f32.mxu0 0.0
    %414 = vmatmul.mubr.f32.gmra.mrb[0].mxu0 %v336
    %v415 = vpop.f32.mrb[0].mxu0
    %v416 = vadd.f32 %v331, %v415
    %v417 = vpop.f32.mrb[0].mxu0
    %418 = vmatprep.mubr.f32.mxu0 0.0
    %419 = vmatmul.mubr.f32.gmra.mrb[0].mxu0 %v339
    %v420 = vpop.f32.mrb[0].mxu0
    %v421 = vadd.f32 %v331, %v420
    %v422 = vpop.f32.mrb[0].mxu0
    %423 = vmatprep.mubr.f32.mxu0 0.0
    %424 = vmatmul.mubr.f32.gmra.mrb[0].mxu0 %v342
    %v425 = vpop.f32.mrb[0].mxu0
    %v426 = vadd.f32 %v331, %v425
    %v427 = vpop.f32.mrb[0].mxu0
    %428 = vdwg.mxu0
    %429 = vst.msk [vmem:[#allocation2] sm:$0xff] %vm31, %v411
    %430 = vst.msk [vmem:[#allocation2 + $0x8] sm:$0xff] %vm31, %v416
    %431 = vst.msk [vmem:[#allocation2 + $0x10] sm:$0xff] %vm31, %v421
    %432 = vst.msk [vmem:[#allocation2 + $0x18] sm:$0xff] %vm31, %v426
    // Predicated region
    $region14: #{gin_node_embeddings.1} parent=1 // pred_check
      _
    $region15: #{gin_node_embeddings.1} parent=1 // pred_check_branch
      %434 = sbr.rel (0) target = $region17
    $region16: #{gin_node_embeddings.1} parent=1 // pred_region
      %s436 = ssub.s32 512, 512
      %437 = vsyncadd [#allocation3], %s436
      %s438 = sshll.u32 [#allocation2], 4
      %s439 = int_to_ptr.vmem [resolvable:$true] %s438
      %444 = dma.vmem_to_hbm [thread:$0]  %s439, 512, %s3, [#allocation3], 128, 128, 8
    $region17: #{gin_node_embeddings.1} parent=1 // pred_fallthru
      _
    // Predicated region
    $region18: #{gin_node_embeddings.1} parent=1 // pred_check
      _
    $region19: #{gin_node_embeddings.1} parent=1 // pred_check_branch
      %446 = sbr.rel (0) target = $region21
    $region20: #{gin_node_embeddings.1} parent=1 // pred_region
      %447 = dma.done [#allocation3], 512
    $region21: #{gin_node_embeddings.1} parent=1 // pred_fallthru
      _
    %448 = vsyncpa [#allocation3], 1

</llo_original>
